<compile_context>
chip_gen: v6e
topology: v6e:2x2x1
jax: 0.10.0
libtpu: 0.0.40
codegen_flags: <defaults>
</compile_context>

<pallas_src>
import functools

import jax
import jax.numpy as jnp
from jax.experimental import pallas as pl
from jax.experimental.pallas import tpu as pltpu

EPS = 1e-5


def _round_up(a, b):
    return -(-a // b) * b


def _pick_row_pack(h):
    """How many image rows to pack into one kernel row (lane layout (p, w, c))."""
    try:
        kind = jax.devices()[0].device_kind.lower()
    except Exception:
        kind = ""
    # v5e/v5p MXU is 128-wide: 2 packed rows (contraction 2*W*C = 128) already
    # fill it and keep the per-row store width modest (1 vst slot on v5e).
    # v6e/v7x MXU is 256-wide: 4 packed rows (contraction 256, output 512).
    pack = 2 if "v5" in kind else 4
    while pack > 1 and h % pack != 0:
        pack //= 2
    return pack


def basic_block_kernel(x_ref, scale_ref, shift_ref, t_ref, bias_ref, o_ref):
    """Fused (folded-BN) affine -> ReLU -> block-diagonal banded matmul conv.

    x_ref:     (TR, P*W*C) bfloat16  row tile, lane = (p, w, c)
    scale_ref: (1,  P*W*C) float32   folded BN scale (per-channel, tiled)
    shift_ref: (1,  P*W*C) float32   folded BN shift
    t_ref:     (P*W*C, O*P*W) bfloat16  block-diagonal Toeplitz, cols = (o, p, w)
    bias_ref:  (1,  O*P*W) float32   conv bias (per-o, tiled)
    o_ref:     (TR, O*P*W) float32   conv output tile
    """
    # BatchNorm (pre-folded scale/shift) + ReLU, in f32 on the VPU
    # (v5e has no bf16 VALU; the upcast is cheap everywhere).
    y = x_ref[...].astype(jnp.float32) * scale_ref[...] + shift_ref[...]
    y = jnp.maximum(y, 0.0)

    # Conv(1, K) over W for all packed rows as ONE MXU matmul
    # (bf16 inputs, f32 accumulation).
    acc = jnp.dot(y.astype(jnp.bfloat16), t_ref[...],
                  preferred_element_type=jnp.float32)

    o_ref[...] = (acc + bias_ref[...]).astype(o_ref.dtype)


def basic_block_forward(x_nchw, gamma, beta, conv_w, conv_b, *,
                        block_rows=512, row_pack=None):
    """x_nchw: (B, C, H, W); conv_w: (O, C, 1, K).  Returns (B, C+O, H, W)."""
    B, C, H, W = x_nchw.shape
    O, _, _, K = conv_w.shape
    pad_w = (K - 1) // 2

    pack = row_pack if row_pack is not None else _pick_row_pack(H)
    while pack > 1 and H % pack != 0:
        pack //= 2

    # ---- BatchNorm2d train-mode batch stats (single pass over x) -----------
    # var = E[x^2] - E[x]^2; fine for roughly-centered data.  Keep the
    # two-pass form if channels have huge mean / tiny variance (cancellation).
    m1 = jnp.mean(x_nchw, axis=(0, 2, 3))
    m2 = jnp.mean(x_nchw * x_nchw, axis=(0, 2, 3))
    var = jnp.maximum(m2 - m1 * m1, 0.0)                      # biased (PyTorch train)
    scale_c = gamma * jax.lax.rsqrt(var + EPS)
    shift_c = beta - m1 * scale_c

    # Per-lane BN scale/shift for lane order (p, w, c); conv bias for (o, p, w).
    scale = jnp.tile(scale_c, pack * W).reshape(1, pack * W * C)
    shift = jnp.tile(shift_c, pack * W).reshape(1, pack * W * C)
    bias = jnp.repeat(conv_b, pack * W).reshape(1, O * pack * W)

    # ---- Banded (Toeplitz) conv matrix, block-diagonal over packed rows -----
    # base: T_base[w_s, c, o, w_d] = conv_w[o, c, 0, w_s - w_d + pad] inside band
    w_kco = jnp.transpose(conv_w[:, :, 0, :], (2, 1, 0))                 # (K, C, O)
    wq = jnp.arange(W)
    k_idx = wq[:, None] - wq[None, :] + pad_w                            # (Ws, Wd)
    valid = (k_idx >= 0) & (k_idx < K)
    t4 = jnp.where(valid[:, :, None, None],
                   w_kco[jnp.clip(k_idx, 0, K - 1)], 0.0)                # (Ws, Wd, C, O)
    t_base = jnp.transpose(t4, (0, 2, 3, 1))                             # (Ws, C, O, Wd)
    eye_p = jnp.eye(pack, dtype=t_base.dtype)
    # rows (p, w_s, c) ; cols (o, p, w_d) ; zero when row-p != col-p
    t_big = jnp.einsum('pq,scod->pscoqd', eye_p, t_base)
    t_mat = t_big.reshape(pack * W * C, O * pack * W).astype(jnp.bfloat16)

    # ---- Lane-dense packed row slabs: (B*H/P, P*W*C), bf16 ------------------
    x_rows = jnp.transpose(x_nchw, (0, 2, 3, 1)).reshape(B * H, W * C)   # lane (w, c)
    Rp = (B * H) // pack
    x2d = x_rows.reshape(Rp, pack * W * C).astype(jnp.bfloat16)

    # ---- Row-tile size / grid ------------------------------------------------
    tr = min(_round_up(int(block_rows), 8), _round_up(Rp, 8))
    if Rp >= 64:
        # keep >= ~8 grid steps: pipeline depth + v7x 2-TensorCore sharding
        tr = min(tr, _round_up(pl.cdiv(Rp, 8), 8))
    tr = max(tr, 8)
    R_pad = _round_up(Rp, tr)
    if R_pad > Rp:
        x2d = jnp.pad(x2d, ((0, R_pad - Rp), (0, 0)))
    grid = (R_pad // tr,)

    # Double-buffered VMEM at tr=512, P=4 is only ~2.6 MiB; fits every
    # generation's default scoped limit.  Set vmem_limit_bytes if tr >> 2048.
    out2d = pl.pallas_call(
        basic_block_kernel,
        out_shape=jax.ShapeDtypeStruct((R_pad, O * pack * W), x_nchw.dtype),
        grid=grid,
        in_specs=[
            pl.BlockSpec((tr, pack * W * C), lambda i: (i, 0)),      # x row tile
            pl.BlockSpec((1, pack * W * C), lambda i: (0, 0)),       # BN scale (resident)
            pl.BlockSpec((1, pack * W * C), lambda i: (0, 0)),       # BN shift (resident)
            pl.BlockSpec((pack * W * C, O * pack * W), lambda i: (0, 0)),  # Toeplitz
            pl.BlockSpec((1, O * pack * W), lambda i: (0, 0)),       # conv bias
        ],
        out_specs=pl.BlockSpec((tr, O * pack * W), lambda i: (i, 0)),
        compiler_params=pltpu.CompilerParams(
            dimension_semantics=("parallel",)),
    )(x2d, scale, shift, t_mat, bias)

    # ---- Unpack (o, p, w) lanes back to NCHW, then torch.cat([x, out], 1) ----
    out = out2d[:Rp].reshape(B, H // pack, O, pack, W)
    out_nchw = jnp.transpose(out, (0, 2, 1, 3, 4)).reshape(B, O, H, W)
    return jnp.concatenate([x_nchw, out_nchw], axis=1)


def reference_forward(x_nchw, gamma, beta, conv_w, conv_b):
    """Pure-JAX reference matching PyTorch BasicBlock.forward (train-mode BN)."""
    mean = jnp.mean(x_nchw, axis=(0, 2, 3), keepdims=True)
    var = jnp.mean((x_nchw - mean) ** 2, axis=(0, 2, 3), keepdims=True)
    y = (x_nchw - mean) * jax.lax.rsqrt(var + EPS)
    y = y * gamma.reshape(1, -1, 1, 1) + beta.reshape(1, -1, 1, 1)
    y = jnp.maximum(y, 0.0)
    K = conv_w.shape[-1]
    pad = (K - 1) // 2
    out = jax.lax.conv_general_dilated(
        y, conv_w, window_strides=(1, 1), padding=((0, 0), (pad, pad)),
        dimension_numbers=("NCHW", "OIHW", "NCHW"),
        precision=jax.lax.Precision.HIGHEST,
    ) + conv_b.reshape(1, -1, 1, 1)
    return jnp.concatenate([x_nchw, out], axis=1)


if __name__ == "__main__":
    key = jax.random.PRNGKey(0)
    B, C, H, W = 2, 4, 16, 16        # in_planes = 4
    layers = 8                       # conv output channels
    K = 15                           # conv kernel width (1, 15)

    k1, k2, k3, k4, k5 = jax.random.split(key, 5)
    x = jax.random.normal(k1, (B, C, H, W), jnp.float32)
    gamma = jax.random.uniform(k2, (C,), jnp.float32, 0.5, 1.5)      # BN weight
    beta = 0.1 * jax.random.normal(k3, (C,), jnp.float32)            # BN bias
    conv_w = 0.1 * jax.random.normal(k4, (layers, C, 1, K), jnp.float32)
    conv_b = 0.1 * jax.random.normal(k5, (layers,), jnp.float32)

    ref = reference_forward(x, gamma, beta, conv_w, conv_b)

    # Default config: device-tuned row packing, large row tiles.
    fwd = jax.jit(functools.partial(basic_block_forward))
    out = jax.block_until_ready(fwd(x, gamma, beta, conv_w, conv_b))
    assert out.shape == (B, C + layers, H, W), out.shape
    # bf16 activations + bf16 matmul vs. an f32 HIGHEST-precision reference.
    assert jnp.allclose(out, ref, atol=2e-2, rtol=2e-2), \
        float(jnp.max(jnp.abs(out - ref)))

    # Small-tile config: 2-row packing, 8-row tiles -> multi-step grid so the
    # pipeline / parallel grid path is exercised at this toy size.
    fwd_small = jax.jit(functools.partial(basic_block_forward,
                                          block_rows=8, row_pack=2))
    out2 = jax.block_until_ready(fwd_small(x, gamma, beta, conv_w, conv_b))
    assert jnp.allclose(out2, ref, atol=2e-2, rtol=2e-2), \
        float(jnp.max(jnp.abs(out2 - ref)))

    print("KERNEL_OK")
</pallas_src>

<mosaic_0001>
module attributes {stable_mosaic.version = 11 : i64} {
  func.func @basic_block_kernel(%arg0: i32, %arg1: memref<8x256xbf16, #tpu.memory_space<vmem>>, %arg2: memref<1x256xf32, #tpu.memory_space<vmem>>, %arg3: memref<1x256xf32, #tpu.memory_space<vmem>>, %arg4: memref<256x512xbf16, #tpu.memory_space<vmem>>, %arg5: memref<1x512xf32, #tpu.memory_space<vmem>>, %arg6: memref<8x512xf32, #tpu.memory_space<vmem>>) attributes {dimension_semantics = [#tpu.dimension_semantics<parallel>], iteration_bounds = array<i64: 1>, scalar_prefetch = 0 : i64, scratch_operands = 0 : i64, tpu.core_type = #tpu.core_type<tc>, window_params = [{transform_indices = @transform_0, window_bounds = array<i64: 8, 256>}, {pipeline_mode = #tpu.pipeline_mode<synchronous>, transform_indices = @transform_1, window_bounds = array<i64: 1, 256>}, {pipeline_mode = #tpu.pipeline_mode<synchronous>, transform_indices = @transform_2, window_bounds = array<i64: 1, 256>}, {pipeline_mode = #tpu.pipeline_mode<synchronous>, transform_indices = @transform_3, window_bounds = array<i64: 256, 512>}, {pipeline_mode = #tpu.pipeline_mode<synchronous>, transform_indices = @transform_4, window_bounds = array<i64: 1, 512>}, {transform_indices = @transform_5, window_bounds = array<i64: 8, 512>}]} {
    %c0 = arith.constant 0 : index
    %c0_0 = arith.constant 0 : index
    %0 = vector.load %arg1[%c0, %c0_0] : memref<8x256xbf16, #tpu.memory_space<vmem>>, vector<8x256xbf16>
    %1 = arith.extf %0 : vector<8x256xbf16> to vector<8x256xf32>
    %c0_1 = arith.constant 0 : index
    %c0_2 = arith.constant 0 : index
    %2 = vector.load %arg2[%c0_1, %c0_2] : memref<1x256xf32, #tpu.memory_space<vmem>>, vector<1x256xf32>
    %3 = vector.broadcast %2 : vector<1x256xf32> to vector<8x256xf32>
    %4 = arith.mulf %1, %3 : vector<8x256xf32>
    %c0_3 = arith.constant 0 : index
    %c0_4 = arith.constant 0 : index
    %5 = vector.load %arg3[%c0_3, %c0_4] : memref<1x256xf32, #tpu.memory_space<vmem>>, vector<1x256xf32>
    %6 = vector.broadcast %5 : vector<1x256xf32> to vector<8x256xf32>
    %7 = arith.addf %4, %6 : vector<8x256xf32>
    %cst = arith.constant 0.000000e+00 : f32
    %8 = vector.broadcast %cst : f32 to vector<8x256xf32>
    %9 = arith.maximumf %7, %8 : vector<8x256xf32>
    %10 = arith.truncf %9 : vector<8x256xf32> to vector<8x256xbf16>
    %c0_5 = arith.constant 0 : index
    %c0_6 = arith.constant 0 : index
    %11 = vector.load %arg4[%c0_5, %c0_6] : memref<256x512xbf16, #tpu.memory_space<vmem>>, vector<256x512xbf16>
    %cst_7 = arith.constant dense<0.000000e+00> : vector<8x512xf32>
    %12 = tpu.matmul %10, %11, %cst_7 {dimension_numbers = #tpu.dot_dimension_numbers<[1], [0], [0], [1], [0, 0, 1, 1], [], []>} : vector<8x256xbf16>, vector<256x512xbf16>, vector<8x512xf32> -> vector<8x512xf32>
    %c0_8 = arith.constant 0 : index
    %c0_9 = arith.constant 0 : index
    %13 = vector.load %arg5[%c0_8, %c0_9] : memref<1x512xf32, #tpu.memory_space<vmem>>, vector<1x512xf32>
    %14 = vector.broadcast %13 : vector<1x512xf32> to vector<8x512xf32>
    %15 = arith.addf %12, %14 : vector<8x512xf32>
    %c0_10 = arith.constant 0 : index
    %c0_11 = arith.constant 0 : index
    %16 = vector.load %arg6[%c0_10, %c0_11] : memref<8x512xf32, #tpu.memory_space<vmem>>, vector<8x512xf32>
    tpu.vector_store %arg6[%c0_10, %c0_11], %15 {strides = array<i32>} : memref<8x512xf32, #tpu.memory_space<vmem>>, vector<8x512xf32>,
    return
  }
  func.func @transform_0(%arg0: i32) -> (i32, i32) {
    %c0_i32 = arith.constant 0 : i32
    %c0_i32_0 = arith.constant 0 : i32
    return %arg0, %c0_i32 : i32, i32
  }
  func.func @transform_1(%arg0: i32) -> (i32, i32) {
    %c0_i32 = arith.constant 0 : i32
    %c0_i32_0 = arith.constant 0 : i32
    %c0_i32_1 = arith.constant 0 : i32
    return %c0_i32, %c0_i32_0 : i32, i32
  }
  func.func @transform_2(%arg0: i32) -> (i32, i32) {
    %c0_i32 = arith.constant 0 : i32
    %c0_i32_0 = arith.constant 0 : i32
    %c0_i32_1 = arith.constant 0 : i32
    return %c0_i32, %c0_i32_0 : i32, i32
  }
  func.func @transform_3(%arg0: i32) -> (i32, i32) {
    %c0_i32 = arith.constant 0 : i32
    %c0_i32_0 = arith.constant 0 : i32
    %c0_i32_1 = arith.constant 0 : i32
    return %c0_i32, %c0_i32_0 : i32, i32
  }
  func.func @transform_4(%arg0: i32) -> (i32, i32) {
    %c0_i32 = arith.constant 0 : i32
    %c0_i32_0 = arith.constant 0 : i32
    %c0_i32_1 = arith.constant 0 : i32
    return %c0_i32, %c0_i32_0 : i32, i32
  }
  func.func @transform_5(%arg0: i32) -> (i32, i32) {
    %c0_i32 = arith.constant 0 : i32
    %c0_i32_0 = arith.constant 0 : i32
    return %arg0, %c0_i32 : i32, i32
  }
}

</mosaic_0001>

<llo_original>
// kernel: tile.13
$region0: #{tile.13}
  #allocation0 [shape = 's32[1]{0}', space=sflag, size = 0x4, scoped, tag = 'scoped memory for tile.13']
  %s0 = inlined_call_operand.vmem [shape: f32[4], index: 0, kind: input, shape index: {}]
  %s1 = inlined_call_operand.vmem [shape: f32[64,4], index: 1, kind: output, shape index: {}]
  // Predicated region
  $region2: #{tile.13} parent=0 // pred_check
    _
  $region3: #{tile.13} parent=0 // pred_check_branch
    %3 = sbr.rel (0) target = $region5
  $region4: #{tile.13} parent=0 // pred_region
    _
  $region5: #{tile.13} parent=0 // pred_fallthru
    _
  %v4 = vld [vmem:[%s0] ss:$0 sm:$0xff]
  %5 = vst [vmem:[%s1] sm:$0xff] %v4
  %s6 = scalar_lea.vmem %s1, 8
  %7 = vst [vmem:[%s6] sm:$0xff] %v4
  %s8 = scalar_lea.vmem %s1, 16
  %9 = vst [vmem:[%s8] sm:$0xff] %v4
  %s10 = scalar_lea.vmem %s1, 24
  %11 = vst [vmem:[%s10] sm:$0xff] %v4
  %s12 = scalar_lea.vmem %s1, 32
  %13 = vst [vmem:[%s12] sm:$0xff] %v4
  %s14 = scalar_lea.vmem %s1, 40
  %15 = vst [vmem:[%s14] sm:$0xff] %v4
  %s16 = scalar_lea.vmem %s1, 48
  %17 = vst [vmem:[%s16] sm:$0xff] %v4
  %s18 = scalar_lea.vmem %s1, 56
  %19 = vst [vmem:[%s18] sm:$0xff] %v4

// kernel: tile.14
$region0: #{tile.14}
  %s0 = inlined_call_operand.vmem [shape: f32[64,4], index: 0, kind: input, shape index: {}]
  %s1 = inlined_call_operand.vmem [shape: f32[1,256], index: 1, kind: output, shape index: {}]
  $region1: #{tile.14} parent=0
    #allocation0 [shape = 'u8[8192]{0}', space=vmem, size = 0x2000, scoped, tag = 'scoped mem for output reshape']
    %v2 = vld [vmem:[%s0] sm:$0x1]
    %s3 = scalar_lea.vmem %s0, 31
    %v4 = vld [vmem:[%s3] sm:$0x2]
    %vm5 = vcmask 1041409
    %v6 = vsel %vm5, %v4, %v2
    %vm7 = vcmask 31744
    %8 = vst.msk [vmem:[#allocation0] ss:$8 sm:$0x3] %vm7, %v6
    %s9 = scalar_lea.vmem %s0, 31
    %v10 = vld [vmem:[%s9] sm:$0x1]
    %s11 = scalar_lea.vmem %s0, 62
    %v12 = vld [vmem:[%s11] sm:$0x2]
    %vm13 = vcmask 1041409
    %v14 = vsel %vm13, %v12, %v10
    %15 = vrot.lane.b32.xlu0 %v14, 124
    %v16 = vpop.permute.xlu0 %15
    %vm17 = vcmask 1048544
    %18 = vst.msk [vmem:[#allocation0] ss:$8 sm:$0x3] %vm17, %v16
    %s19 = scalar_lea.vmem %s0, 30
    %v20 = vld [vmem:[%s19] sm:$0x1]
    %s21 = scalar_lea.vmem %s0, 61
    %v22 = vld [vmem:[%s21] sm:$0x2]
    %vm23 = vcmask 1041409
    %v24 = vsel %vm23, %v22, %v20
    %25 = vrot.lane.b32.xlu0 %v24, 120
    %v26 = vpop.permute.xlu0 %25
    %vm27 = vcmask 1015744
    %28 = vst.msk [vmem:[#allocation0] ss:$8 sm:$0x3] %vm27, %v26
    %s29 = scalar_lea.vmem %s0, 29
    %v30 = vld [vmem:[%s29] sm:$0x1]
    %s31 = scalar_lea.vmem %s0, 60
    %v32 = vld [vmem:[%s31] sm:$0x2]
    %vm33 = vcmask 1041409
    %v34 = vsel %vm33, %v32, %v30
    %35 = vrot.lane.b32.xlu0 %v34, 116
    %v36 = vpop.permute.xlu0 %35
    %vm37 = vcmask 982944
    %38 = vst.msk [vmem:[#allocation0] ss:$8 sm:$0x3] %vm37, %v36
    %s39 = scalar_lea.vmem %s0, 28
    %v40 = vld [vmem:[%s39] sm:$0x1]
    %s41 = scalar_lea.vmem %s0, 59
    %v42 = vld [vmem:[%s41] sm:$0x2]
    %vm43 = vcmask 1041409
    %v44 = vsel %vm43, %v42, %v40
    %45 = vrot.lane.b32.xlu0 %v44, 112
    %v46 = vpop.permute.xlu0 %45
    %vm47 = vcmask 950144
    %48 = vst.msk [vmem:[#allocation0] ss:$8 sm:$0x3] %vm47, %v46
    %s49 = scalar_lea.vmem %s0, 27
    %v50 = vld [vmem:[%s49] sm:$0x1]
    %s51 = scalar_lea.vmem %s0, 58
    %v52 = vld [vmem:[%s51] sm:$0x2]
    %vm53 = vcmask 1041409
    %v54 = vsel %vm53, %v52, %v50
    %55 = vrot.lane.b32.xlu0 %v54, 108
    %v56 = vpop.permute.xlu0 %55
    %vm57 = vcmask 917344
    %58 = vst.msk [vmem:[#allocation0] ss:$8 sm:$0x3] %vm57, %v56
    %s59 = scalar_lea.vmem %s0, 26
    %v60 = vld [vmem:[%s59] sm:$0x1]
    %s61 = scalar_lea.vmem %s0, 57
    %v62 = vld [vmem:[%s61] sm:$0x2]
    %vm63 = vcmask 1041409
    %v64 = vsel %vm63, %v62, %v60
    %65 = vrot.lane.b32.xlu0 %v64, 104
    %v66 = vpop.permute.xlu0 %65
    %vm67 = vcmask 884544
    %68 = vst.msk [vmem:[#allocation0] ss:$8 sm:$0x3] %vm67, %v66
    %s69 = scalar_lea.vmem %s0, 25
    %v70 = vld [vmem:[%s69] sm:$0x1]
    %s71 = scalar_lea.vmem %s0, 56
    %v72 = vld [vmem:[%s71] sm:$0x2]
    %vm73 = vcmask 1041409
    %v74 = vsel %vm73, %v72, %v70
    %75 = vrot.lane.b32.xlu0 %v74, 100
    %v76 = vpop.permute.xlu0 %75
    %vm77 = vcmask 851744
    %78 = vst.msk [vmem:[#allocation0] ss:$8 sm:$0x3] %vm77, %v76
    %s79 = scalar_lea.vmem %s0, 24
    %v80 = vld [vmem:[%s79] sm:$0x1]
    %s81 = scalar_lea.vmem %s0, 55
    %v82 = vld [vmem:[%s81] sm:$0x2]
    %vm83 = vcmask 1041409
    %v84 = vsel %vm83, %v82, %v80
    %85 = vrot.lane.b32.xlu0 %v84, 96
    %v86 = vpop.permute.xlu0 %85
    %vm87 = vcmask 818944
    %88 = vst.msk [vmem:[#allocation0] ss:$8 sm:$0x3] %vm87, %v86
    %s89 = scalar_lea.vmem %s0, 23
    %v90 = vld [vmem:[%s89] sm:$0x1]
    %s91 = scalar_lea.vmem %s0, 54
    %v92 = vld [vmem:[%s91] sm:$0x2]
    %vm93 = vcmask 1041409
    %v94 = vsel %vm93, %v92, %v90
    %95 = vrot.lane.b32.xlu0 %v94, 92
    %v96 = vpop.permute.xlu0 %95
    %vm97 = vcmask 786144
    %98 = vst.msk [vmem:[#allocation0] ss:$8 sm:$0x3] %vm97, %v96
    %s99 = scalar_lea.vmem %s0, 22
    %v100 = vld [vmem:[%s99] sm:$0x1]
    %s101 = scalar_lea.vmem %s0, 53
    %v102 = vld [vmem:[%s101] sm:$0x2]
    %vm103 = vcmask 1041409
    %v104 = vsel %vm103, %v102, %v100
    %105 = vrot.lane.b32.xlu0 %v104, 88
    %v106 = vpop.permute.xlu0 %105
    %vm107 = vcmask 753344
    %108 = vst.msk [vmem:[#allocation0] ss:$8 sm:$0x3] %vm107, %v106
    %s109 = scalar_lea.vmem %s0, 21
    %v110 = vld [vmem:[%s109] sm:$0x1]
    %s111 = scalar_lea.vmem %s0, 52
    %v112 = vld [vmem:[%s111] sm:$0x2]
    %vm113 = vcmask 1041409
    %v114 = vsel %vm113, %v112, %v110
    %115 = vrot.lane.b32.xlu0 %v114, 84
    %v116 = vpop.permute.xlu0 %115
    %vm117 = vcmask 720544
    %118 = vst.msk [vmem:[#allocation0] ss:$8 sm:$0x3] %vm117, %v116
    %s119 = scalar_lea.vmem %s0, 20
    %v120 = vld [vmem:[%s119] sm:$0x1]
    %s121 = scalar_lea.vmem %s0, 51
    %v122 = vld [vmem:[%s121] sm:$0x2]
    %vm123 = vcmask 1041409
    %v124 = vsel %vm123, %v122, %v120
    %125 = vrot.lane.b32.xlu0 %v124, 80
    %v126 = vpop.permute.xlu0 %125
    %vm127 = vcmask 687744
    %128 = vst.msk [vmem:[#allocation0] ss:$8 sm:$0x3] %vm127, %v126
    %s129 = scalar_lea.vmem %s0, 19
    %v130 = vld [vmem:[%s129] sm:$0x1]
    %s131 = scalar_lea.vmem %s0, 50
    %v132 = vld [vmem:[%s131] sm:$0x2]
    %vm133 = vcmask 1041409
    %v134 = vsel %vm133, %v132, %v130
    %135 = vrot.lane.b32.xlu0 %v134, 76
    %v136 = vpop.permute.xlu0 %135
    %vm137 = vcmask 654944
    %138 = vst.msk [vmem:[#allocation0] ss:$8 sm:$0x3] %vm137, %v136
    %s139 = scalar_lea.vmem %s0, 18
    %v140 = vld [vmem:[%s139] sm:$0x1]
    %s141 = scalar_lea.vmem %s0, 49
    %v142 = vld [vmem:[%s141] sm:$0x2]
    %vm143 = vcmask 1041409
    %v144 = vsel %vm143, %v142, %v140
    %145 = vrot.lane.b32.xlu0 %v144, 72
    %v146 = vpop.permute.xlu0 %145
    %vm147 = vcmask 622144
    %148 = vst.msk [vmem:[#allocation0] ss:$8 sm:$0x3] %vm147, %v146
    %s149 = scalar_lea.vmem %s0, 17
    %v150 = vld [vmem:[%s149] sm:$0x1]
    %s151 = scalar_lea.vmem %s0, 48
    %v152 = vld [vmem:[%s151] sm:$0x2]
    %vm153 = vcmask 1041409
    %v154 = vsel %vm153, %v152, %v150
    %155 = vrot.lane.b32.xlu0 %v154, 68
    %v156 = vpop.permute.xlu0 %155
    %vm157 = vcmask 589344
    %158 = vst.msk [vmem:[#allocation0] ss:$8 sm:$0x3] %vm157, %v156
    %s159 = scalar_lea.vmem %s0, 16
    %v160 = vld [vmem:[%s159] sm:$0x1]
    %s161 = scalar_lea.vmem %s0, 47
    %v162 = vld [vmem:[%s161] sm:$0x2]
    %vm163 = vcmask 1041409
    %v164 = vsel %vm163, %v162, %v160
    %165 = vrot.lane.b32.xlu0 %v164, 64
    %v166 = vpop.permute.xlu0 %165
    %vm167 = vcmask 556544
    %168 = vst.msk [vmem:[#allocation0] ss:$8 sm:$0x3] %vm167, %v166
    %s169 = scalar_lea.vmem %s0, 15
    %v170 = vld [vmem:[%s169] sm:$0x1]
    %s171 = scalar_lea.vmem %s0, 46
    %v172 = vld [vmem:[%s171] sm:$0x2]
    %vm173 = vcmask 1041409
    %v174 = vsel %vm173, %v172, %v170
    %175 = vrot.lane.b32.xlu0 %v174, 60
    %v176 = vpop.permute.xlu0 %175
    %vm177 = vcmask 523744
    %178 = vst.msk [vmem:[#allocation0] ss:$8 sm:$0x3] %vm177, %v176
    %s179 = scalar_lea.vmem %s0, 14
    %v180 = vld [vmem:[%s179] sm:$0x1]
    %s181 = scalar_lea.vmem %s0, 45
    %v182 = vld [vmem:[%s181] sm:$0x2]
    %vm183 = vcmask 1041409
    %v184 = vsel %vm183, %v182, %v180
    %185 = vrot.lane.b32.xlu0 %v184, 56
    %v186 = vpop.permute.xlu0 %185
    %vm187 = vcmask 490944
    %188 = vst.msk [vmem:[#allocation0] ss:$8 sm:$0x3] %vm187, %v186
    %s189 = scalar_lea.vmem %s0, 13
    %v190 = vld [vmem:[%s189] sm:$0x1]
    %s191 = scalar_lea.vmem %s0, 44
    %v192 = vld [vmem:[%s191] sm:$0x2]
    %vm193 = vcmask 1041409
    %v194 = vsel %vm193, %v192, %v190
    %195 = vrot.lane.b32.xlu0 %v194, 52
    %v196 = vpop.permute.xlu0 %195
    %vm197 = vcmask 458144
    %198 = vst.msk [vmem:[#allocation0] ss:$8 sm:$0x3] %vm197, %v196
    %s199 = scalar_lea.vmem %s0, 12
    %v200 = vld [vmem:[%s199] sm:$0x1]
    %s201 = scalar_lea.vmem %s0, 43
    %v202 = vld [vmem:[%s201] sm:$0x2]
    %vm203 = vcmask 1041409
    %v204 = vsel %vm203, %v202, %v200
    %205 = vrot.lane.b32.xlu0 %v204, 48
    %v206 = vpop.permute.xlu0 %205
    %vm207 = vcmask 425344
    %208 = vst.msk [vmem:[#allocation0] ss:$8 sm:$0x3] %vm207, %v206
    %s209 = scalar_lea.vmem %s0, 11
    %v210 = vld [vmem:[%s209] sm:$0x1]
    %s211 = scalar_lea.vmem %s0, 42
    %v212 = vld [vmem:[%s211] sm:$0x2]
    %vm213 = vcmask 1041409
    %v214 = vsel %vm213, %v212, %v210
    %215 = vrot.lane.b32.xlu0 %v214, 44
    %v216 = vpop.permute.xlu0 %215
    %vm217 = vcmask 392544
    %218 = vst.msk [vmem:[#allocation0] ss:$8 sm:$0x3] %vm217, %v216
    %s219 = scalar_lea.vmem %s0, 10
    %v220 = vld [vmem:[%s219] sm:$0x1]
    %s221 = scalar_lea.vmem %s0, 41
    %v222 = vld [vmem:[%s221] sm:$0x2]
    %vm223 = vcmask 1041409
    %v224 = vsel %vm223, %v222, %v220
    %225 = vrot.lane.b32.xlu0 %v224, 40
    %v226 = vpop.permute.xlu0 %225
    %vm227 = vcmask 359744
    %228 = vst.msk [vmem:[#allocation0] ss:$8 sm:$0x3] %vm227, %v226
    %s229 = scalar_lea.vmem %s0, 9
    %v230 = vld [vmem:[%s229] sm:$0x1]
    %s231 = scalar_lea.vmem %s0, 40
    %v232 = vld [vmem:[%s231] sm:$0x2]
    %vm233 = vcmask 1041409
    %v234 = vsel %vm233, %v232, %v230
    %235 = vrot.lane.b32.xlu0 %v234, 36
    %v236 = vpop.permute.xlu0 %235
    %vm237 = vcmask 326944
    %238 = vst.msk [vmem:[#allocation0] ss:$8 sm:$0x3] %vm237, %v236
    %s239 = scalar_lea.vmem %s0, 8
    %v240 = vld [vmem:[%s239] sm:$0x1]
    %s241 = scalar_lea.vmem %s0, 39
    %v242 = vld [vmem:[%s241] sm:$0x2]
    %vm243 = vcmask 1041409
    %v244 = vsel %vm243, %v242, %v240
    %245 = vrot.lane.b32.xlu0 %v244, 32
    %v246 = vpop.permute.xlu0 %245
    %vm247 = vcmask 294144
    %248 = vst.msk [vmem:[#allocation0] ss:$8 sm:$0x3] %vm247, %v246
    %s249 = scalar_lea.vmem %s0, 7
    %v250 = vld [vmem:[%s249] sm:$0x1]
    %s251 = scalar_lea.vmem %s0, 38
    %v252 = vld [vmem:[%s251] sm:$0x2]
    %vm253 = vcmask 1041409
    %v254 = vsel %vm253, %v252, %v250
    %255 = vrot.lane.b32.xlu0 %v254, 28
    %v256 = vpop.permute.xlu0 %255
    %vm257 = vcmask 261344
    %258 = vst.msk [vmem:[#allocation0] ss:$8 sm:$0x3] %vm257, %v256
    %s259 = scalar_lea.vmem %s0, 6
    %v260 = vld [vmem:[%s259] sm:$0x1]
    %s261 = scalar_lea.vmem %s0, 37
    %v262 = vld [vmem:[%s261] sm:$0x2]
    %vm263 = vcmask 1041409
    %v264 = vsel %vm263, %v262, %v260
    %265 = vrot.lane.b32.xlu0 %v264, 24
    %v266 = vpop.permute.xlu0 %265
    %vm267 = vcmask 228544
    %268 = vst.msk [vmem:[#allocation0] ss:$8 sm:$0x3] %vm267, %v266
    %s269 = scalar_lea.vmem %s0, 5
    %v270 = vld [vmem:[%s269] sm:$0x1]
    %s271 = scalar_lea.vmem %s0, 36
    %v272 = vld [vmem:[%s271] sm:$0x2]
    %vm273 = vcmask 1041409
    %v274 = vsel %vm273, %v272, %v270
    %275 = vrot.lane.b32.xlu0 %v274, 20
    %v276 = vpop.permute.xlu0 %275
    %vm277 = vcmask 195744
    %278 = vst.msk [vmem:[#allocation0] ss:$8 sm:$0x3] %vm277, %v276
    %s279 = scalar_lea.vmem %s0, 4
    %v280 = vld [vmem:[%s279] sm:$0x1]
    %s281 = scalar_lea.vmem %s0, 35
    %v282 = vld [vmem:[%s281] sm:$0x2]
    %vm283 = vcmask 1041409
    %v284 = vsel %vm283, %v282, %v280
    %285 = vrot.lane.b32.xlu0 %v284, 16
    %v286 = vpop.permute.xlu0 %285
    %vm287 = vcmask 162944
    %288 = vst.msk [vmem:[#allocation0] ss:$8 sm:$0x3] %vm287, %v286
    %s289 = scalar_lea.vmem %s0, 3
    %v290 = vld [vmem:[%s289] sm:$0x1]
    %s291 = scalar_lea.vmem %s0, 34
    %v292 = vld [vmem:[%s291] sm:$0x2]
    %vm293 = vcmask 1041409
    %v294 = vsel %vm293, %v292, %v290
    %295 = vrot.lane.b32.xlu0 %v294, 12
    %v296 = vpop.permute.xlu0 %295
    %vm297 = vcmask 130144
    %298 = vst.msk [vmem:[#allocation0] ss:$8 sm:$0x3] %vm297, %v296
    %s299 = scalar_lea.vmem %s0, 2
    %v300 = vld [vmem:[%s299] sm:$0x1]
    %s301 = scalar_lea.vmem %s0, 33
    %v302 = vld [vmem:[%s301] sm:$0x2]
    %vm303 = vcmask 1041409
    %v304 = vsel %vm303, %v302, %v300
    %305 = vrot.lane.b32.xlu0 %v304, 8
    %v306 = vpop.permute.xlu0 %305
    %vm307 = vcmask 97344
    %308 = vst.msk [vmem:[#allocation0] ss:$8 sm:$0x3] %vm307, %v306
    %s309 = scalar_lea.vmem %s0, 1
    %v310 = vld [vmem:[%s309] sm:$0x1]
    %s311 = scalar_lea.vmem %s0, 32
    %v312 = vld [vmem:[%s311] sm:$0x2]
    %vm313 = vcmask 1041409
    %v314 = vsel %vm313, %v312, %v310
    %315 = vrot.lane.b32.xlu0 %v314, 4
    %v316 = vpop.permute.xlu0 %315
    %vm317 = vcmask 64544
    %318 = vst.msk [vmem:[#allocation0] ss:$8 sm:$0x3] %vm317, %v316
    %s320 = sshll.u32 1, 1
    %s321 = ssub.s32 %s320, 1
    %v323 = vld [vmem:[#allocation0] sm:%s321]
    %s324 = sshll.u32 1, 1
    %s325 = ssub.s32 %s324, 1
    %326 = vst [vmem:[%s1] sm:%s325] %v323
    %s327 = scalar_lea.vmem [#allocation0], 8
    %v328 = vld [vmem:[%s327] sm:%s321]
    %s329 = sshll.u32 1, 1
    %s330 = ssub.s32 %s329, 1
    %s331 = scalar_lea.vmem %s1, 1
    %332 = vst [vmem:[%s331] sm:%s330] %v328

// kernel: basic_block_forward.1
$region0: #{basic_block_forward.1}
  #allocation0 [shape = 'u32[]', space=smem, size = 0x4, offset = 0x4, fixed_abs, tag = 'smem constant byte address 0x4 - core index']
  #allocation1 [shape = 'u32[144,128]{1,0:T(1,128)}', space=vmem, size = 0x12000, scoped, tag = 'internal scratch']
  %s0 = inlined_call_operand.vmem [shape: bf16[8,256], index: 0, kind: input, shape index: {}]
  %s1 = inlined_call_operand.vmem [shape: f32[1,256], index: 1, kind: input, shape index: {}]
  %s2 = inlined_call_operand.vmem [shape: f32[1,256], index: 2, kind: input, shape index: {}]
  %s3 = inlined_call_operand.vmem [shape: bf16[256,512], index: 3, kind: input, shape index: {}]
  %s4 = inlined_call_operand.vmem [shape: f32[1,512], index: 4, kind: input, shape index: {}]
  %s5 = inlined_call_operand.vmem [shape: f32[8,512], index: 5, kind: output, shape index: {}]
  %s6 = sld [smem:[#allocation0]]
  $region30: #{basic_block_forward.1} parent=0
    _
  %s8 = ssub.s32 1, %s6
  %s9 = scalar_select 0, %s8, %s6
  // Predicated region
  $region2: #{basic_block_forward.1} parent=0 // pred_check
    _
  $region3: #{basic_block_forward.1} parent=0 // pred_check_branch
    %11 = sbr.rel (0) target = $region5
  $region4: #{basic_block_forward.1} parent=0 // pred_region
    _
  $region5: #{basic_block_forward.1} parent=0 // pred_fallthru
    _
  // Predicated region
  $region6: #{basic_block_forward.1} parent=0 // pred_check
    _
  $region7: #{basic_block_forward.1} parent=0 // pred_check_branch
    %13 = sbr.rel (0) target = $region9
  $region8: #{basic_block_forward.1} parent=0 // pred_region
    _
  $region9: #{basic_block_forward.1} parent=0 // pred_fallthru
    _
  // Predicated region
  $region10: #{basic_block_forward.1} parent=0 // pred_check
    _
  $region11: #{basic_block_forward.1} parent=0 // pred_check_branch
    %15 = sbr.rel (0) target = $region13
  $region12: #{basic_block_forward.1} parent=0 // pred_region
    _
  $region13: #{basic_block_forward.1} parent=0 // pred_fallthru
    _
  // Predicated region
  $region14: #{basic_block_forward.1} parent=0 // pred_check
    _
  $region15: #{basic_block_forward.1} parent=0 // pred_check_branch
    %17 = sbr.rel (0) target = $region17
  $region16: #{basic_block_forward.1} parent=0 // pred_region
    _
  $region17: #{basic_block_forward.1} parent=0 // pred_fallthru
    _
  // Predicated region
  $region18: #{basic_block_forward.1} parent=0 // pred_check
    _
  $region19: #{basic_block_forward.1} parent=0 // pred_check_branch
    %19 = sbr.rel (0) target = $region21
  $region20: #{basic_block_forward.1} parent=0 // pred_region
    _
  $region21: #{basic_block_forward.1} parent=0 // pred_fallthru
    _
  %v20 = vld [vmem:[%s0] sm:$0xff]
  %v21 = vunpack.c.l.bf16 %v20
  %v22 = vunpack.c.h.bf16 %v20
  %v23 = vld [vmem:[%s1] sm:$0x3]
  %v25 = vlaneseq
  %v26 = vshrl.u32 %v25, 7
  %v27 = vsub.s32 0, %v26
  %v28 = vrot.slane %v23, %v27
  %v29 = vlaneseq
  %v30 = vshrl.u32 %v29, 7
  %v31 = vsub.s32 1, %v30
  %v32 = vrot.slane %v23, %v31
  %v35 = vmul.f32 %v21, %v28
  %v36 = vmul.f32 %v22, %v32
  %v37 = vld [vmem:[%s2] sm:$0x3]
  %v39 = vlaneseq
  %v40 = vshrl.u32 %v39, 7
  %v41 = vsub.s32 0, %v40
  %v42 = vrot.slane %v37, %v41
  %v43 = vlaneseq
  %v44 = vshrl.u32 %v43, 7
  %v45 = vsub.s32 1, %v44
  %v46 = vrot.slane %v37, %v45
  %v49 = vadd.f32 %v35, %v42
  %v50 = vadd.f32 %v36, %v46
  %v51 = vmax.f32 %v49, 0.0
  %v52 = vmax.f32 %v50, 0.0
  %v53 = vpack.c.bf16 %v51, %v51
  %v54 = vpack.c.bf16 %v52, %v52
  %v55 = vld [vmem:[%s3] sm:$0xff]
  %v56 = vld [vmem:[%s3 + $0x8] sm:$0xff]
  %v57 = vld [vmem:[%s3 + $0x10] sm:$0xff]
  %v58 = vld [vmem:[%s3 + $0x18] sm:$0xff]
  %v59 = vld [vmem:[%s3 + $0x20] sm:$0xff]
  %v60 = vld [vmem:[%s3 + $0x28] sm:$0xff]
  %v61 = vld [vmem:[%s3 + $0x30] sm:$0xff]
  %v62 = vld [vmem:[%s3 + $0x38] sm:$0xff]
  %v63 = vld [vmem:[%s3 + $0x40] sm:$0xff]
  %v64 = vld [vmem:[%s3 + $0x48] sm:$0xff]
  %v65 = vld [vmem:[%s3 + $0x50] sm:$0xff]
  %v66 = vld [vmem:[%s3 + $0x58] sm:$0xff]
  %v67 = vld [vmem:[%s3 + $0x60] sm:$0xff]
  %v68 = vld [vmem:[%s3 + $0x68] sm:$0xff]
  %v69 = vld [vmem:[%s3 + $0x70] sm:$0xff]
  %v70 = vld [vmem:[%s3 + $0x78] sm:$0xff]
  %v71 = vld [vmem:[%s3 + $0x80] sm:$0xff]
  %v72 = vld [vmem:[%s3 + $0x88] sm:$0xff]
  %v73 = vld [vmem:[%s3 + $0x90] sm:$0xff]
  %v74 = vld [vmem:[%s3 + $0x98] sm:$0xff]
  %v75 = vld [vmem:[%s3 + $0xa0] sm:$0xff]
  %v76 = vld [vmem:[%s3 + $0xa8] sm:$0xff]
  %v77 = vld [vmem:[%s3 + $0xb0] sm:$0xff]
  %v78 = vld [vmem:[%s3 + $0xb8] sm:$0xff]
  %v79 = vld [vmem:[%s3 + $0xc0] sm:$0xff]
  %v80 = vld [vmem:[%s3 + $0xc8] sm:$0xff]
  %v81 = vld [vmem:[%s3 + $0xd0] sm:$0xff]
  %v82 = vld [vmem:[%s3 + $0xd8] sm:$0xff]
  %v83 = vld [vmem:[%s3 + $0xe0] sm:$0xff]
  %v84 = vld [vmem:[%s3 + $0xe8] sm:$0xff]
  %v85 = vld [vmem:[%s3 + $0xf0] sm:$0xff]
  %v86 = vld [vmem:[%s3 + $0xf8] sm:$0xff]
  %v87 = vld [vmem:[%s3 + $0x100] sm:$0xff]
  %v88 = vld [vmem:[%s3 + $0x108] sm:$0xff]
  %v89 = vld [vmem:[%s3 + $0x110] sm:$0xff]
  %v90 = vld [vmem:[%s3 + $0x118] sm:$0xff]
  %v91 = vld [vmem:[%s3 + $0x120] sm:$0xff]
  %v92 = vld [vmem:[%s3 + $0x128] sm:$0xff]
  %v93 = vld [vmem:[%s3 + $0x130] sm:$0xff]
  %v94 = vld [vmem:[%s3 + $0x138] sm:$0xff]
  %v95 = vld [vmem:[%s3 + $0x140] sm:$0xff]
  %v96 = vld [vmem:[%s3 + $0x148] sm:$0xff]
  %v97 = vld [vmem:[%s3 + $0x150] sm:$0xff]
  %v98 = vld [vmem:[%s3 + $0x158] sm:$0xff]
  %v99 = vld [vmem:[%s3 + $0x160] sm:$0xff]
  %v100 = vld [vmem:[%s3 + $0x168] sm:$0xff]
  %v101 = vld [vmem:[%s3 + $0x170] sm:$0xff]
  %v102 = vld [vmem:[%s3 + $0x178] sm:$0xff]
  %v103 = vld [vmem:[%s3 + $0x180] sm:$0xff]
  %v104 = vld [vmem:[%s3 + $0x188] sm:$0xff]
  %v105 = vld [vmem:[%s3 + $0x190] sm:$0xff]
  %v106 = vld [vmem:[%s3 + $0x198] sm:$0xff]
  %v107 = vld [vmem:[%s3 + $0x1a0] sm:$0xff]
  %v108 = vld [vmem:[%s3 + $0x1a8] sm:$0xff]
  %v109 = vld [vmem:[%s3 + $0x1b0] sm:$0xff]
  %v110 = vld [vmem:[%s3 + $0x1b8] sm:$0xff]
  %v111 = vld [vmem:[%s3 + $0x1c0] sm:$0xff]
  %v112 = vld [vmem:[%s3 + $0x1c8] sm:$0xff]
  %v113 = vld [vmem:[%s3 + $0x1d0] sm:$0xff]
  %v114 = vld [vmem:[%s3 + $0x1d8] sm:$0xff]
  %v115 = vld [vmem:[%s3 + $0x1e0] sm:$0xff]
  %v116 = vld [vmem:[%s3 + $0x1e8] sm:$0xff]
  %v117 = vld [vmem:[%s3 + $0x1f0] sm:$0xff]
  %v118 = vld [vmem:[%s3 + $0x1f8] sm:$0xff]
  %v119 = vld [vmem:[%s4] sm:$0xf]
  %v121 = vlaneseq
  %v122 = vshrl.u32 %v121, 7
  %v123 = vsub.s32 0, %v122
  %v124 = vrot.slane %v119, %v123
  %v125 = vlaneseq
  %v126 = vshrl.u32 %v125, 7
  %v127 = vsub.s32 1, %v126
  %v128 = vrot.slane %v119, %v127
  %v129 = vlaneseq
  %v130 = vshrl.u32 %v129, 7
  %v131 = vsub.s32 2, %v130
  %v132 = vrot.slane %v119, %v131
  %v133 = vlaneseq
  %v134 = vshrl.u32 %v133, 7
  %v135 = vsub.s32 3, %v134
  %v136 = vrot.slane %v119, %v135
  %v205 = vunpack.c.l.b16 %v55
  %v206 = vunpack.c.h.b16 %v55
  %v207 = vunpack.c.l.b16 %v56
  %v208 = vunpack.c.h.b16 %v56
  %v209 = vunpack.c.l.b16 %v57
  %v210 = vunpack.c.h.b16 %v57
  %v211 = vunpack.c.l.b16 %v58
  %v212 = vunpack.c.h.b16 %v58
  %v213 = vunpack.c.l.b16 %v59
  %v214 = vunpack.c.h.b16 %v59
  %v215 = vunpack.c.l.b16 %v60
  %v216 = vunpack.c.h.b16 %v60
  %v217 = vunpack.c.l.b16 %v61
  %v218 = vunpack.c.h.b16 %v61
  %v219 = vunpack.c.l.b16 %v62
  %v220 = vunpack.c.h.b16 %v62
  %v221 = vunpack.c.l.b16 %v63
  %v222 = vunpack.c.h.b16 %v63
  %v223 = vunpack.c.l.b16 %v64
  %v224 = vunpack.c.h.b16 %v64
  %v225 = vunpack.c.l.b16 %v65
  %v226 = vunpack.c.h.b16 %v65
  %v227 = vunpack.c.l.b16 %v66
  %v228 = vunpack.c.h.b16 %v66
  %v229 = vunpack.c.l.b16 %v67
  %v230 = vunpack.c.h.b16 %v67
  %v231 = vunpack.c.l.b16 %v68
  %v232 = vunpack.c.h.b16 %v68
  %v233 = vunpack.c.l.b16 %v69
  %v234 = vunpack.c.h.b16 %v69
  %v235 = vunpack.c.l.b16 %v70
  %v236 = vunpack.c.h.b16 %v70
  %v237 = vunpack.c.l.b16 %v71
  %v238 = vunpack.c.h.b16 %v71
  %v239 = vunpack.c.l.b16 %v72
  %v240 = vunpack.c.h.b16 %v72
  %v241 = vunpack.c.l.b16 %v73
  %v242 = vunpack.c.h.b16 %v73
  %v243 = vunpack.c.l.b16 %v74
  %v244 = vunpack.c.h.b16 %v74
  %v245 = vunpack.c.l.b16 %v75
  %v246 = vunpack.c.h.b16 %v75
  %v247 = vunpack.c.l.b16 %v76
  %v248 = vunpack.c.h.b16 %v76
  %v249 = vunpack.c.l.b16 %v77
  %v250 = vunpack.c.h.b16 %v77
  %v251 = vunpack.c.l.b16 %v78
  %v252 = vunpack.c.h.b16 %v78
  %v253 = vunpack.c.l.b16 %v79
  %v254 = vunpack.c.h.b16 %v79
  %v255 = vunpack.c.l.b16 %v80
  %v256 = vunpack.c.h.b16 %v80
  %v257 = vunpack.c.l.b16 %v81
  %v258 = vunpack.c.h.b16 %v81
  %v259 = vunpack.c.l.b16 %v82
  %v260 = vunpack.c.h.b16 %v82
  %v261 = vunpack.c.l.b16 %v83
  %v262 = vunpack.c.h.b16 %v83
  %v263 = vunpack.c.l.b16 %v84
  %v264 = vunpack.c.h.b16 %v84
  %v265 = vunpack.c.l.b16 %v85
  %v266 = vunpack.c.h.b16 %v85
  %v267 = vunpack.c.l.b16 %v86
  %v268 = vunpack.c.h.b16 %v86
  %v269 = vunpack.c.l.b16 %v87
  %v270 = vunpack.c.h.b16 %v87
  %v271 = vunpack.c.l.b16 %v88
  %v272 = vunpack.c.h.b16 %v88
  %v273 = vunpack.c.l.b16 %v89
  %v274 = vunpack.c.h.b16 %v89
  %v275 = vunpack.c.l.b16 %v90
  %v276 = vunpack.c.h.b16 %v90
  %v277 = vunpack.c.l.b16 %v91
  %v278 = vunpack.c.h.b16 %v91
  %v279 = vunpack.c.l.b16 %v92
  %v280 = vunpack.c.h.b16 %v92
  %v281 = vunpack.c.l.b16 %v93
  %v282 = vunpack.c.h.b16 %v93
  %v283 = vunpack.c.l.b16 %v94
  %v284 = vunpack.c.h.b16 %v94
  %v285 = vunpack.c.l.b16 %v95
  %v286 = vunpack.c.h.b16 %v95
  %v287 = vunpack.c.l.b16 %v96
  %v288 = vunpack.c.h.b16 %v96
  %v289 = vunpack.c.l.b16 %v97
  %v290 = vunpack.c.h.b16 %v97
  %v291 = vunpack.c.l.b16 %v98
  %v292 = vunpack.c.h.b16 %v98
  %v293 = vunpack.c.l.b16 %v99
  %v294 = vunpack.c.h.b16 %v99
  %v295 = vunpack.c.l.b16 %v100
  %v296 = vunpack.c.h.b16 %v100
  %v297 = vunpack.c.l.b16 %v101
  %v298 = vunpack.c.h.b16 %v101
  %v299 = vunpack.c.l.b16 %v102
  %v300 = vunpack.c.h.b16 %v102
  %v301 = vunpack.c.l.b16 %v103
  %v302 = vunpack.c.h.b16 %v103
  %v303 = vunpack.c.l.b16 %v104
  %v304 = vunpack.c.h.b16 %v104
  %v305 = vunpack.c.l.b16 %v105
  %v306 = vunpack.c.h.b16 %v105
  %v307 = vunpack.c.l.b16 %v106
  %v308 = vunpack.c.h.b16 %v106
  %v309 = vunpack.c.l.b16 %v107
  %v310 = vunpack.c.h.b16 %v107
  %v311 = vunpack.c.l.b16 %v108
  %v312 = vunpack.c.h.b16 %v108
  %v313 = vunpack.c.l.b16 %v109
  %v314 = vunpack.c.h.b16 %v109
  %v315 = vunpack.c.l.b16 %v110
  %v316 = vunpack.c.h.b16 %v110
  %v317 = vunpack.c.l.b16 %v111
  %v318 = vunpack.c.h.b16 %v111
  %v319 = vunpack.c.l.b16 %v112
  %v320 = vunpack.c.h.b16 %v112
  %v321 = vunpack.c.l.b16 %v113
  %v322 = vunpack.c.h.b16 %v113
  %v323 = vunpack.c.l.b16 %v114
  %v324 = vunpack.c.h.b16 %v114
  %v325 = vunpack.c.l.b16 %v115
  %v326 = vunpack.c.h.b16 %v115
  %v327 = vunpack.c.l.b16 %v116
  %v328 = vunpack.c.h.b16 %v116
  %v329 = vunpack.c.l.b16 %v117
  %v330 = vunpack.c.h.b16 %v117
  %v331 = vunpack.c.l.b16 %v118
  %v332 = vunpack.c.h.b16 %v118
  %v333 = vpack.c.b16 %v209, %v205
  %v334 = vpack.c.b16 %v210, %v206
  %v335 = vpack.c.b16 %v211, %v207
  %v336 = vpack.c.b16 %v212, %v208
  %v337 = vpack.c.b16 %v217, %v213
  %v338 = vpack.c.b16 %v218, %v214
  %v339 = vpack.c.b16 %v219, %v215
  %v340 = vpack.c.b16 %v220, %v216
  %v341 = vpack.c.b16 %v225, %v221
  %v342 = vpack.c.b16 %v226, %v222
  %v343 = vpack.c.b16 %v227, %v223
  %v344 = vpack.c.b16 %v228, %v224
  %v345 = vpack.c.b16 %v233, %v229
  %v346 = vpack.c.b16 %v234, %v230
  %v347 = vpack.c.b16 %v235, %v231
  %v348 = vpack.c.b16 %v236, %v232
  %v349 = vpack.c.b16 %v241, %v237
  %v350 = vpack.c.b16 %v242, %v238
  %v351 = vpack.c.b16 %v243, %v239
  %v352 = vpack.c.b16 %v244, %v240
  %v353 = vpack.c.b16 %v249, %v245
  %v354 = vpack.c.b16 %v250, %v246
  %v355 = vpack.c.b16 %v251, %v247
  %v356 = vpack.c.b16 %v252, %v248
  %v357 = vpack.c.b16 %v257, %v253
  %v358 = vpack.c.b16 %v258, %v254
  %v359 = vpack.c.b16 %v259, %v255
  %v360 = vpack.c.b16 %v260, %v256
  %v361 = vpack.c.b16 %v265, %v261
  %v362 = vpack.c.b16 %v266, %v262
  %v363 = vpack.c.b16 %v267, %v263
  %v364 = vpack.c.b16 %v268, %v264
  %v365 = vpack.c.b16 %v273, %v269
  %v366 = vpack.c.b16 %v274, %v270
  %v367 = vpack.c.b16 %v275, %v271
  %v368 = vpack.c.b16 %v276, %v272
  %v369 = vpack.c.b16 %v281, %v277
  %v370 = vpack.c.b16 %v282, %v278
  %v371 = vpack.c.b16 %v283, %v279
  %v372 = vpack.c.b16 %v284, %v280
  %v373 = vpack.c.b16 %v289, %v285
  %v374 = vpack.c.b16 %v290, %v286
  %v375 = vpack.c.b16 %v291, %v287
  %v376 = vpack.c.b16 %v292, %v288
  %v377 = vpack.c.b16 %v297, %v293
  %v378 = vpack.c.b16 %v298, %v294
  %v379 = vpack.c.b16 %v299, %v295
  %v380 = vpack.c.b16 %v300, %v296
  %v381 = vpack.c.b16 %v305, %v301
  %v382 = vpack.c.b16 %v306, %v302
  %v383 = vpack.c.b16 %v307, %v303
  %v384 = vpack.c.b16 %v308, %v304
  %v385 = vpack.c.b16 %v313, %v309
  %v386 = vpack.c.b16 %v314, %v310
  %v387 = vpack.c.b16 %v315, %v311
  %v388 = vpack.c.b16 %v316, %v312
  %v389 = vpack.c.b16 %v321, %v317
  %v390 = vpack.c.b16 %v322, %v318
  %v391 = vpack.c.b16 %v323, %v319
  %v392 = vpack.c.b16 %v324, %v320
  %v393 = vpack.c.b16 %v329, %v325
  %v394 = vpack.c.b16 %v330, %v326
  %v395 = vpack.c.b16 %v331, %v327
  %v396 = vpack.c.b16 %v332, %v328
  %461 = vmatprep.subr.bf16.mxu0 %v362
  %462 = vmatpush1.bf16.msra.mxu0 %v361
  %463 = vmatprep.subr.bf16.mxu0 %v358
  %464 = vmatpush1.bf16.msra.mxu0 %v357
  %465 = vmatprep.subr.bf16.mxu0 %v354
  %466 = vmatpush1.bf16.msra.mxu0 %v353
  %467 = vmatprep.subr.bf16.mxu0 %v350
  %468 = vmatpush1.bf16.msra.mxu0 %v349
  %469 = vmatprep.subr.bf16.mxu0 %v346
  %470 = vmatpush1.bf16.msra.mxu0 %v345
  %471 = vmatprep.subr.bf16.mxu0 %v342
  %472 = vmatpush1.bf16.msra.mxu0 %v341
  %473 = vmatprep.subr.bf16.mxu0 %v338
  %474 = vmatpush1.bf16.msra.mxu0 %v337
  %475 = vmatprep.subr.bf16.mxu0 %v334
  %476 = vmatpush1.bf16.msra.mxu0 %v333
  %477 = vmatprep.subr.bf16.mxu0 %v394
  %478 = vmatpush2.bf16.msra.mxu0 %v393
  %479 = vmatprep.subr.bf16.mxu0 %v390
  %480 = vmatpush2.bf16.msra.mxu0 %v389
  %481 = vmatprep.subr.bf16.mxu0 %v386
  %482 = vmatpush2.bf16.msra.mxu0 %v385
  %483 = vmatprep.subr.bf16.mxu0 %v382
  %484 = vmatpush2.bf16.msra.mxu0 %v381
  %485 = vmatprep.subr.bf16.mxu0 %v378
  %486 = vmatpush2.bf16.msra.mxu0 %v377
  %487 = vmatprep.subr.bf16.mxu0 %v374
  %488 = vmatpush2.bf16.msra.mxu0 %v373
  %489 = vmatprep.subr.bf16.mxu0 %v370
  %490 = vmatpush2.bf16.msra.mxu0 %v369
  %491 = vmatprep.subr.bf16.mxu0 %v366
  %492 = vmatpush2.bf16.msra.mxu0 %v365
  %493 = vmatprep.mubr.bf16.mxu0 %v54
  %494 = vmatmul.mubr.bf16.gmra.mxu0 %v53
  %v495 = vpop.f32.mrf.mxu0
  %v496 = vadd.f32 %v124, %v495
  %v497 = vpop.f32.mrf.mxu0
  %v498 = vadd.f32 %v128, %v497
  %v499 = vpop.f32.mrf.mxu0
  %v500 = vpop.f32.mrf.mxu0
  %501 = vdwg.mxu0
  %502 = vmatprep.subr.bf16.mxu0 %v364
  %503 = vmatpush1.bf16.msra.mxu0 %v363
  %504 = vmatprep.subr.bf16.mxu0 %v360
  %505 = vmatpush1.bf16.msra.mxu0 %v359
  %506 = vmatprep.subr.bf16.mxu0 %v356
  %507 = vmatpush1.bf16.msra.mxu0 %v355
  %508 = vmatprep.subr.bf16.mxu0 %v352
  %509 = vmatpush1.bf16.msra.mxu0 %v351
  %510 = vmatprep.subr.bf16.mxu0 %v348
  %511 = vmatpush1.bf16.msra.mxu0 %v347
  %512 = vmatprep.subr.bf16.mxu0 %v344
  %513 = vmatpush1.bf16.msra.mxu0 %v343
  %514 = vmatprep.subr.bf16.mxu0 %v340
  %515 = vmatpush1.bf16.msra.mxu0 %v339
  %516 = vmatprep.subr.bf16.mxu0 %v336
  %517 = vmatpush1.bf16.msra.mxu0 %v335
  %518 = vmatprep.subr.bf16.mxu0 %v396
  %519 = vmatpush2.bf16.msra.mxu0 %v395
  %520 = vmatprep.subr.bf16.mxu0 %v392
  %521 = vmatpush2.bf16.msra.mxu0 %v391
  %522 = vmatprep.subr.bf16.mxu0 %v388
  %523 = vmatpush2.bf16.msra.mxu0 %v387
  %524 = vmatprep.subr.bf16.mxu0 %v384
  %525 = vmatpush2.bf16.msra.mxu0 %v383
  %526 = vmatprep.subr.bf16.mxu0 %v380
  %527 = vmatpush2.bf16.msra.mxu0 %v379
  %528 = vmatprep.subr.bf16.mxu0 %v376
  %529 = vmatpush2.bf16.msra.mxu0 %v375
  %530 = vmatprep.subr.bf16.mxu0 %v372
  %531 = vmatpush2.bf16.msra.mxu0 %v371
  %532 = vmatprep.subr.bf16.mxu0 %v368
  %533 = vmatpush2.bf16.msra.mxu0 %v367
  %534 = vmatprep.mubr.bf16.mxu0 %v54
  %535 = vmatmul.mubr.bf16.gmra.mxu0 %v53
  %v536 = vpop.f32.mrf.mxu0
  %v537 = vadd.f32 %v132, %v536
  %v538 = vpop.f32.mrf.mxu0
  %v539 = vadd.f32 %v136, %v538
  %v540 = vpop.f32.mrf.mxu0
  %v541 = vpop.f32.mrf.mxu0
  %542 = vdwg.mxu0
  %543 = vst [vmem:[%s5] sm:$0xff] %v496
  %544 = vst [vmem:[%s5 + $0x8] sm:$0xff] %v498
  %545 = vst [vmem:[%s5 + $0x10] sm:$0xff] %v537
  %546 = vst [vmem:[%s5 + $0x18] sm:$0xff] %v539
  // Predicated region
  $region22: #{basic_block_forward.1} parent=0 // pred_check
    _
  $region23: #{basic_block_forward.1} parent=0 // pred_check_branch
    %548 = sbr.rel (0) target = $region25
  $region24: #{basic_block_forward.1} parent=0 // pred_region
    _
  $region25: #{basic_block_forward.1} parent=0 // pred_fallthru
    _
  // Predicated region
  $region26: #{basic_block_forward.1} parent=0 // pred_check
    _
  $region27: #{basic_block_forward.1} parent=0 // pred_check_branch
    %550 = sbr.rel (0) target = $region29
  $region28: #{basic_block_forward.1} parent=0 // pred_region
    _
  $region29: #{basic_block_forward.1} parent=0 // pred_fallthru
    _

</llo_original>
